<compile_context>
chip_gen: v5e
topology: v5e:2x2
jax: 0.10.0
libtpu: 0.0.40
codegen_flags: <defaults>
</compile_context>

<pallas_src>
import functools
import math

import jax
import jax.numpy as jnp
from jax import lax
from jax.experimental import pallas as pl
from jax.experimental.pallas import tpu as pltpu

_IMG_D = 28 * 28      # 784, matches torch .view(-1, 28*28)
_LANES = 128
_M_PLUS = 0.9
_M_MINUS = 0.1
_LAMBDA = 0.5
_RECON_SCALE = 0.0005


def _round_up(x, m):
    return ((x + m - 1) // m) * m


def _capsule_loss_kernel(b_ref, img_ref, rec_ref, lab_ref, cls_ref, out_ref,
                         acc_margin, acc_recon, *, tile_rows, n_inner, masked):
    # Grid = (num_cores, n_inner); axis 1 is the reduction axis.
    step = pl.program_id(1)

    @pl.when(step == 0)
    def _init():
        acc_margin[...] = jnp.zeros_like(acc_margin)
        acc_recon[...] = jnp.zeros_like(acc_recon)

    # ---- reconstruction term: sum((recon - image)^2), ragged tail masked ----
    diff = rec_ref[...].astype(jnp.float32) - img_ref[...].astype(jnp.float32)
    d2 = diff * diff
    if masked:
        # Logical (unclamped) tile index decides which rows are real.
        logical_tile = pl.program_id(0) * n_inner + step
        row0 = logical_tile * tile_rows
        rows = row0 + lax.broadcasted_iota(jnp.int32, (tile_rows, 1), 0)
        d2 = jnp.where(rows < b_ref[0], d2, 0.0)   # select, safe vs. OOB garbage
    # Per-sublane-group partial sums (pure VPU adds); no per-step XLU reduce.
    acc_recon[...] += jnp.sum(d2.reshape(-1, 8, d2.shape[-1]), axis=0)

    # ---- margin term: T*relu(m+ - v)^2 + lambda*(1-T)*relu(v - m-)^2 --------
    #                 = lambda*right + T*(left - lambda*right)
    lab = lab_ref[...].astype(jnp.float32)
    cls = cls_ref[...].astype(jnp.float32)
    left = jnp.maximum(_M_PLUS - cls, 0.0)
    left = left * left
    right = jnp.maximum(cls - _M_MINUS, 0.0)
    right = right * right
    half_right = _LAMBDA * right
    contrib = half_right + lab * (left - half_right)
    acc_margin[...] += jnp.sum(contrib.reshape(-1, 8, _LANES), axis=0)

    @pl.when(step == pl.num_programs(1) - 1)
    def _finalize():
        total = jnp.sum(acc_margin[...]) + _RECON_SCALE * jnp.sum(acc_recon[...])
        total = total / b_ref[0].astype(jnp.float32)
        out_ref[...] = jnp.broadcast_to(total, out_ref.shape)


def capsule_loss(images, labels, classes, reconstructions):
    """images: [B,1,28,28] NCHW; labels/classes: [B,C]; reconstructions: [B,784]."""
    img2d = images.reshape(-1, _IMG_D)               # same flattening as torch .view
    rec2d = reconstructions.reshape(-1, _IMG_D)
    B = img2d.shape[0]
    C = labels.shape[-1]

    # ---- batch tiling (no padding / copy of the wide [B,784] streams) -------
    TB = min(1024, _round_up(B, 8))
    t_real = pl.cdiv(B, TB)
    NC = 2 if t_real >= 2 else 1                     # keep both v7x TCs busy
    n_inner = pl.cdiv(t_real, NC)
    t_pad = NC * n_inner                             # padded (even) tile count
    masked = (t_pad * TB != B)                       # ragged tail and/or padded tile
    last_real = t_real - 1

    # ---- labels / classes: tiny -> zero-pad + lane-dense flatten is ~free ----
    g = math.gcd(TB, 8 * _LANES)
    Cp = _round_up(C, (8 * _LANES) // g)             # ensures TB*Cp % 1024 == 0
    Bp = t_pad * TB
    lab_ld = jnp.pad(labels, ((0, Bp - B), (0, Cp - C))).reshape(Bp * Cp // _LANES, _LANES)
    cls_ld = jnp.pad(classes, ((0, Bp - B), (0, Cp - C))).reshape(Bp * Cp // _LANES, _LANES)
    lab_rows_tile = TB * Cp // _LANES

    def wide_idx(c, i, b):
        # Clamp padded steps onto the last real tile: block index is then
        # unchanged from the previous step on that core -> DMA is skipped,
        # and the masked recompute contributes 0.
        return (jnp.minimum(c * n_inner + i, last_real), 0)

    def lab_idx(c, i, b):
        return (c * n_inner + i, 0)

    img_spec = pl.BlockSpec((TB, _IMG_D), wide_idx)
    rec_spec = pl.BlockSpec((TB, _IMG_D), wide_idx)
    lab_spec = pl.BlockSpec((lab_rows_tile, _LANES), lab_idx)
    cls_spec = pl.BlockSpec((lab_rows_tile, _LANES), lab_idx)
    out_spec = pl.BlockSpec((8, _LANES), lambda c, i, b: (c, 0))

    isz = lambda a: jnp.dtype(a.dtype).itemsize
    cost = pl.CostEstimate(
        flops=int(3 * B * _IMG_D + 8 * B * C),
        transcendentals=0,
        bytes_accessed=int(B * _IMG_D * (isz(img2d) + isz(rec2d))
                           + Bp * Cp * (isz(lab_ld) + isz(cls_ld))
                           + NC * 8 * _LANES * 4),
    )

    kernel = functools.partial(_capsule_loss_kernel,
                               tile_rows=TB, n_inner=n_inner, masked=masked)

    out = pl.pallas_call(
        kernel,
        out_shape=jax.ShapeDtypeStruct((NC * 8, _LANES), jnp.float32),
        grid_spec=pltpu.PrefetchScalarGridSpec(
            num_scalar_prefetch=1,                   # true B lives in SMEM
            grid=(NC, n_inner),
            in_specs=[img_spec, rec_spec, lab_spec, cls_spec],
            out_specs=out_spec,
            scratch_shapes=[pltpu.VMEM((8, _LANES), jnp.float32),   # margin acc
                            pltpu.VMEM((8, _IMG_D), jnp.float32)],  # recon acc
        ),
        compiler_params=pltpu.CompilerParams(
            dimension_semantics=("parallel", "arbitrary"),
            vmem_limit_bytes=32 * 1024 * 1024),
        cost_estimate=cost,
    )(jnp.asarray([B], dtype=jnp.int32), img2d, rec2d, lab_ld, cls_ld)

    # Per-core partials already include the 0.0005 scale and the 1/B factor.
    return jnp.sum(out.reshape(NC, 8, _LANES)[:, 0, 0])


def capsule_loss_ref(images, labels, classes, reconstructions):
    """Pure-JAX reference mirroring the PyTorch forward exactly."""
    left = jnp.maximum(0.9 - classes, 0.0) ** 2
    right = jnp.maximum(classes - 0.1, 0.0) ** 2
    margin_loss = jnp.sum(labels * left + 0.5 * (1.0 - labels) * right)
    img_flat = images.reshape(-1, _IMG_D)
    recon_loss = jnp.sum((reconstructions.reshape(-1, _IMG_D) - img_flat) ** 2)
    return (margin_loss + 0.0005 * recon_loss) / img_flat.shape[0]


if __name__ == "__main__":
    key = jax.random.PRNGKey(0)
    k_img, k_cls, k_lbl, k_rec = jax.random.split(key, 4)

    B, C = 2, 10  # small batch, 10 capsule classes (MNIST-style)
    images = jax.random.uniform(k_img, (B, 1, 28, 28), dtype=jnp.float32)
    classes = jax.random.uniform(k_cls, (B, C), dtype=jnp.float32)
    label_idx = jax.random.randint(k_lbl, (B,), 0, C)
    labels = jax.nn.one_hot(label_idx, C, dtype=jnp.float32)
    reconstructions = jax.random.uniform(k_rec, (B, 28 * 28), dtype=jnp.float32)

    loss = jax.block_until_ready(capsule_loss(images, labels, classes, reconstructions))
    ref = capsule_loss_ref(images, labels, classes, reconstructions)
    assert jnp.allclose(loss, ref, rtol=1e-5, atol=1e-5), (loss, ref)

    # Exercise: ragged 2-tile / 2-core split (B=1030), odd real-tile count with
    # a clamped+masked padded tile (B=2600 -> grid (2,2)), and an exact single
    # tile with no masking (B=1024).
    for B2 in (1030, 2600, 1024):
        k1, k2, k3, k4 = jax.random.split(jax.random.PRNGKey(B2), 4)
        imgs2 = jax.random.uniform(k1, (B2, 1, 28, 28), dtype=jnp.float32)
        cls2 = jax.random.uniform(k2, (B2, C), dtype=jnp.float32)
        lbl2 = jax.nn.one_hot(jax.random.randint(k3, (B2,), 0, C), C, dtype=jnp.float32)
        rec2 = jax.random.uniform(k4, (B2, 28 * 28), dtype=jnp.float32)
        l2 = jax.block_until_ready(capsule_loss(imgs2, lbl2, cls2, rec2))
        r2 = capsule_loss_ref(imgs2, lbl2, cls2, rec2)
        assert jnp.allclose(l2, r2, rtol=2e-4, atol=2e-4), (B2, l2, r2)

    print("KERNEL_OK")
</pallas_src>

<mosaic_0001>
module attributes {stable_mosaic.version = 11 : i64} {
  func.func @_capsule_loss_kernel(%arg0: i32, %arg1: i32, %arg2: memref<1xi32, #tpu.memory_space<smem>>, %arg3: memref<8x784xf32, #tpu.memory_space<vmem>>, %arg4: memref<8x784xf32, #tpu.memory_space<vmem>>, %arg5: memref<8x128xf32, #tpu.memory_space<vmem>>, %arg6: memref<8x128xf32, #tpu.memory_space<vmem>>, %arg7: memref<8x128xf32, #tpu.memory_space<vmem>>, %arg8: memref<8x128xf32, #tpu.memory_space<vmem>>, %arg9: memref<8x784xf32, #tpu.memory_space<vmem>>) attributes {dimension_semantics = [#tpu.dimension_semantics<parallel>, #tpu.dimension_semantics<arbitrary>], iteration_bounds = array<i64: 1, 1>, scalar_prefetch = 1 : i64, scratch_operands = 2 : i64, tpu.core_type = #tpu.core_type<tc>, window_params = [{transform_indices = @transform_0, window_bounds = array<i64: 8, 784>}, {transform_indices = @transform_1, window_bounds = array<i64: 8, 784>}, {transform_indices = @transform_2, window_bounds = array<i64: 8, 128>}, {transform_indices = @transform_3, window_bounds = array<i64: 8, 128>}, {transform_indices = @transform_4, window_bounds = array<i64: 8, 128>}]} {
    %c0_i32 = arith.constant 0 : i32
    %0 = arith.cmpi eq, %arg1, %c0_i32 : i32
    %1 = arith.extui %0 : i1 to i32
    %c0_i32_0 = arith.constant 0 : i32
    %2 = arith.cmpi ne, %1, %c0_i32_0 : i32
    scf.if %2 {
      %cst_26 = arith.constant 0.000000e+00 : f32
      %50 = vector.broadcast %cst_26 : f32 to vector<8x128xf32>
      %c0_27 = arith.constant 0 : index
      %c0_28 = arith.constant 0 : index
      %51 = vector.load %arg8[%c0_27, %c0_28] : memref<8x128xf32, #tpu.memory_space<vmem>>, vector<8x128xf32>
      tpu.vector_store %arg8[%c0_27, %c0_28], %50 {strides = array<i32>} : memref<8x128xf32, #tpu.memory_space<vmem>>, vector<8x128xf32>,
      %cst_29 = arith.constant 0.000000e+00 : f32
      %52 = vector.broadcast %cst_29 : f32 to vector<8x784xf32>
      %c0_30 = arith.constant 0 : index
      %c0_31 = arith.constant 0 : index
      %53 = vector.load %arg9[%c0_30, %c0_31] : memref<8x784xf32, #tpu.memory_space<vmem>>, vector<8x784xf32>
      tpu.vector_store %arg9[%c0_30, %c0_31], %52 {strides = array<i32>} : memref<8x784xf32, #tpu.memory_space<vmem>>, vector<8x784xf32>,
    } else {
    }
    %c0 = arith.constant 0 : index
    %c0_1 = arith.constant 0 : index
    %3 = vector.load %arg4[%c0, %c0_1] : memref<8x784xf32, #tpu.memory_space<vmem>>, vector<8x784xf32>
    %c0_2 = arith.constant 0 : index
    %c0_3 = arith.constant 0 : index
    %4 = vector.load %arg3[%c0_2, %c0_3] : memref<8x784xf32, #tpu.memory_space<vmem>>, vector<8x784xf32>
    %5 = arith.subf %3, %4 : vector<8x784xf32>
    %6 = arith.mulf %5, %5 : vector<8x784xf32>
    %c1_i32 = arith.constant 1 : i32
    %7 = arith.muli %arg0, %c1_i32 : i32
    %8 = arith.addi %7, %arg1 : i32
    %c8_i32 = arith.constant 8 : i32
    %9 = arith.muli %8, %c8_i32 : i32
    %10 = tpu.iota {dimensions = array<i32: 0>} : vector<8x1xi32>
    %11 = vector.broadcast %9 : i32 to vector<8x1xi32>
    %12 = arith.addi %11, %10 : vector<8x1xi32>
    %c0_4 = arith.constant 0 : index
    %13 = memref.load %arg2[%c0_4] : memref<1xi32, #tpu.memory_space<smem>>
    %14 = vector.broadcast %13 : i32 to vector<8x1xi32>
    %15 = arith.cmpi slt, %12, %14 : vector<8x1xi32>
    %cst = arith.constant 0.000000e+00 : f32
    %16 = vector.shape_cast %15 : vector<8x1xi1> to vector<8x1xi1>
    %17 = vector.broadcast %16 : vector<8x1xi1> to vector<8x784xi1>
    %18 = vector.broadcast %cst : f32 to vector<8x784xf32>
    %19 = arith.select %17, %6, %18 : vector<8x784xi1>, vector<8x784xf32>
    %c0_5 = arith.constant 0 : index
    %c0_6 = arith.constant 0 : index
    %20 = vector.load %arg9[%c0_5, %c0_6] : memref<8x784xf32, #tpu.memory_space<vmem>>, vector<8x784xf32>
    %21 = vector.shape_cast %19 : vector<8x784xf32> to vector<1x8x784xf32>
    %cst_7 = arith.constant dense<0.000000e+00> : vector<8x784xf32>
    %22 = vector.multi_reduction <add>, %21, %cst_7 [0] : vector<1x8x784xf32> to vector<8x784xf32>
    %23 = arith.addf %20, %22 : vector<8x784xf32>
    %c0_8 = arith.constant 0 : index
    %c0_9 = arith.constant 0 : index
    %24 = vector.load %arg9[%c0_8, %c0_9] : memref<8x784xf32, #tpu.memory_space<vmem>>, vector<8x784xf32>
    tpu.vector_store %arg9[%c0_8, %c0_9], %23 {strides = array<i32>} : memref<8x784xf32, #tpu.memory_space<vmem>>, vector<8x784xf32>,
    %c0_10 = arith.constant 0 : index
    %c0_11 = arith.constant 0 : index
    %25 = vector.load %arg5[%c0_10, %c0_11] : memref<8x128xf32, #tpu.memory_space<vmem>>, vector<8x128xf32>
    %c0_12 = arith.constant 0 : index
    %c0_13 = arith.constant 0 : index
    %26 = vector.load %arg6[%c0_12, %c0_13] : memref<8x128xf32, #tpu.memory_space<vmem>>, vector<8x128xf32>
    %cst_14 = arith.constant 0.899999976 : f32
    %27 = vector.broadcast %cst_14 : f32 to vector<8x128xf32>
    %28 = arith.subf %27, %26 : vector<8x128xf32>
    %cst_15 = arith.constant 0.000000e+00 : f32
    %29 = vector.broadcast %cst_15 : f32 to vector<8x128xf32>
    %30 = arith.maximumf %28, %29 : vector<8x128xf32>
    %31 = arith.mulf %30, %30 : vector<8x128xf32>
    %cst_16 = arith.constant 1.000000e-01 : f32
    %32 = vector.broadcast %cst_16 : f32 to vector<8x128xf32>
    %33 = arith.subf %26, %32 : vector<8x128xf32>
    %cst_17 = arith.constant 0.000000e+00 : f32
    %34 = vector.broadcast %cst_17 : f32 to vector<8x128xf32>
    %35 = arith.maximumf %33, %34 : vector<8x128xf32>
    %36 = arith.mulf %35, %35 : vector<8x128xf32>
    %cst_18 = arith.constant 5.000000e-01 : f32
    %37 = vector.broadcast %cst_18 : f32 to vector<8x128xf32>
    %38 = arith.mulf %37, %36 : vector<8x128xf32>
    %39 = arith.subf %31, %38 : vector<8x128xf32>
    %40 = arith.mulf %25, %39 : vector<8x128xf32>
    %41 = arith.addf %38, %40 : vector<8x128xf32>
    %c0_19 = arith.constant 0 : index
    %c0_20 = arith.constant 0 : index
    %42 = vector.load %arg8[%c0_19, %c0_20] : memref<8x128xf32, #tpu.memory_space<vmem>>, vector<8x128xf32>
    %43 = vector.shape_cast %41 : vector<8x128xf32> to vector<1x8x128xf32>
    %cst_21 = arith.constant dense<0.000000e+00> : vector<8x128xf32>
    %44 = vector.multi_reduction <add>, %43, %cst_21 [0] : vector<1x8x128xf32> to vector<8x128xf32>
    %45 = arith.addf %42, %44 : vector<8x128xf32>
    %c0_22 = arith.constant 0 : index
    %c0_23 = arith.constant 0 : index
    %46 = vector.load %arg8[%c0_22, %c0_23] : memref<8x128xf32, #tpu.memory_space<vmem>>, vector<8x128xf32>
    tpu.vector_store %arg8[%c0_22, %c0_23], %45 {strides = array<i32>} : memref<8x128xf32, #tpu.memory_space<vmem>>, vector<8x128xf32>,
    %c0_i32_24 = arith.constant 0 : i32
    %47 = arith.cmpi eq, %arg1, %c0_i32_24 : i32
    %48 = arith.extui %47 : i1 to i32
    %c0_i32_25 = arith.constant 0 : i32
    %49 = arith.cmpi ne, %48, %c0_i32_25 : i32
    scf.if %49 {
      %c0_26 = arith.constant 0 : index
      %c0_27 = arith.constant 0 : index
      %50 = vector.load %arg8[%c0_26, %c0_27] : memref<8x128xf32, #tpu.memory_space<vmem>>, vector<8x128xf32>
      %51 = vector.shape_cast %50 : vector<8x128xf32> to vector<1x8x128xf32>
      %cst_28 = arith.constant dense<0.000000e+00> : vector<1xf32>
      %52 = vector.multi_reduction <add>, %51, %cst_28 [1, 2] : vector<1x8x128xf32> to vector<1xf32>
      %53 = vector.shape_cast %52 : vector<1xf32> to vector<1x1x1xf32>
      %54 = vector.extract %53[0, 0, 0] : f32 from vector<1x1x1xf32>
      %c0_29 = arith.constant 0 : index
      %c0_30 = arith.constant 0 : index
      %55 = vector.load %arg9[%c0_29, %c0_30] : memref<8x784xf32, #tpu.memory_space<vmem>>, vector<8x784xf32>
      %56 = vector.shape_cast %55 : vector<8x784xf32> to vector<1x8x784xf32>
      %cst_31 = arith.constant dense<0.000000e+00> : vector<1xf32>
      %57 = vector.multi_reduction <add>, %56, %cst_31 [1, 2] : vector<1x8x784xf32> to vector<1xf32>
      %58 = vector.shape_cast %57 : vector<1xf32> to vector<1x1x1xf32>
      %59 = vector.extract %58[0, 0, 0] : f32 from vector<1x1x1xf32>
      %cst_32 = arith.constant 5.000000e-04 : f32
      %60 = arith.mulf %cst_32, %59 : f32
      %61 = arith.addf %54, %60 : f32
      %c0_33 = arith.constant 0 : index
      %62 = memref.load %arg2[%c0_33] : memref<1xi32, #tpu.memory_space<smem>>
      %63 = arith.sitofp %62 : i32 to f32
      %64 = arith.divf %61, %63 : f32
      %65 = vector.broadcast %64 : f32 to vector<8x128xf32>
      %c0_34 = arith.constant 0 : index
      %c0_35 = arith.constant 0 : index
      %66 = vector.load %arg7[%c0_34, %c0_35] : memref<8x128xf32, #tpu.memory_space<vmem>>, vector<8x128xf32>
      tpu.vector_store %arg7[%c0_34, %c0_35], %65 {strides = array<i32>} : memref<8x128xf32, #tpu.memory_space<vmem>>, vector<8x128xf32>,
    } else {
    }
    return
  }
  func.func @transform_0(%arg0: i32, %arg1: i32, %arg2: memref<1xi32, #tpu.memory_space<smem>>) -> (i32, i32) {
    %c1_i32 = arith.constant 1 : i32
    %0 = arith.muli %arg0, %c1_i32 : i32
    %1 = arith.addi %0, %arg1 : i32
    %c0_i32 = arith.constant 0 : i32
    %2 = arith.minsi %1, %c0_i32 : i32
    %c0_i32_0 = arith.constant 0 : i32
    %c0_i32_1 = arith.constant 0 : i32
    return %2, %c0_i32_0 : i32, i32
  }
  func.func @transform_1(%arg0: i32, %arg1: i32, %arg2: memref<1xi32, #tpu.memory_space<smem>>) -> (i32, i32) {
    %c1_i32 = arith.constant 1 : i32
    %0 = arith.muli %arg0, %c1_i32 : i32
    %1 = arith.addi %0, %arg1 : i32
    %c0_i32 = arith.constant 0 : i32
    %2 = arith.minsi %1, %c0_i32 : i32
    %c0_i32_0 = arith.constant 0 : i32
    %c0_i32_1 = arith.constant 0 : i32
    return %2, %c0_i32_0 : i32, i32
  }
  func.func @transform_2(%arg0: i32, %arg1: i32, %arg2: memref<1xi32, #tpu.memory_space<smem>>) -> (i32, i32) {
    %c1_i32 = arith.constant 1 : i32
    %0 = arith.muli %arg0, %c1_i32 : i32
    %1 = arith.addi %0, %arg1 : i32
    %c0_i32 = arith.constant 0 : i32
    %c0_i32_0 = arith.constant 0 : i32
    return %1, %c0_i32 : i32, i32
  }
  func.func @transform_3(%arg0: i32, %arg1: i32, %arg2: memref<1xi32, #tpu.memory_space<smem>>) -> (i32, i32) {
    %c1_i32 = arith.constant 1 : i32
    %0 = arith.muli %arg0, %c1_i32 : i32
    %1 = arith.addi %0, %arg1 : i32
    %c0_i32 = arith.constant 0 : i32
    %c0_i32_0 = arith.constant 0 : i32
    return %1, %c0_i32 : i32, i32
  }
  func.func @transform_4(%arg0: i32, %arg1: i32, %arg2: memref<1xi32, #tpu.memory_space<smem>>) -> (i32, i32) {
    %c0_i32 = arith.constant 0 : i32
    %c0_i32_0 = arith.constant 0 : i32
    return %arg0, %c0_i32 : i32, i32
  }
}

</mosaic_0001>

<llo_original>
// kernel: tpu_custom_call.1
$region0: #{tpu_custom_call.1}
  #allocation0 [shape = 'u32[]', space=smem, size = 0x4, offset = 0x4, fixed_abs, tag = 'smem constant byte address 0x4 - core index']
  #allocation1 [shape = 'u32[72,128]{1,0:T(1,128)}', space=vmem, size = 0x9000, scoped, tag = 'internal scratch']
  #allocation2 [shape = 'f32[8,128]{1,0:T(8,128)}', space=vmem, size = 0x1000, scoped, tag = 'scratch operand']
  #allocation3 [shape = 'f32[8,784]{1,0:T(8,128)}', space=vmem, size = 0x7000, scoped, tag = 'scratch operand']
  #allocation4 [shape = 's32[1]{0}', space=sflag, size = 0x4, scoped, tag = 'scoped memory for tpu_custom_call.1']
  #allocation5 [shape = 's32[1]{0:T(128)S(6)}', space=smem, size = 0x200, scoped, tag = 'prefetched SMEM operand 0']
  %s0 = inlined_call_operand.<no memory space> [shape: s32[1], index: 0, kind: input, shape index: {}]
  %s1 = inlined_call_operand.hbm [shape: f32[2,784], index: 1, kind: input, shape index: {}]
  %s2 = inlined_call_operand.hbm [shape: f32[2,784], index: 2, kind: input, shape index: {}]
  %s3 = inlined_call_operand.hbm [shape: f32[8,128], index: 3, kind: input, shape index: {}]
  %s4 = inlined_call_operand.hbm [shape: f32[8,128], index: 4, kind: input, shape index: {}]
  %s5 = inlined_call_operand.hbm [shape: f32[8,128], index: 5, kind: output, shape index: {}]
  %s6 = sld [smem:[#allocation0]]
  $region50: #{tpu_custom_call.1} parent=0
    _
  %s8 = ssub.s32 1, %s6
  %s9 = scalar_select 0, %s8, %s6
  %10 = sst [smem:[#allocation5]] %s0
  $region1: #{tpu_custom_call.1} parent=0
    #allocation6 [shape = 'u8[28672]{0}', space=vmem, size = 0x7000, scoped, tag = 'input window, operand 1, single buffered']
    #allocation7 [shape = 's32[1]{0}', space=sflag, size = 0x4, scoped, tag = 'scoped memory for tpu_custom_call.1']
    #allocation8 [shape = 's32[1]{0}', space=sflag, size = 0x4, scoped, tag = 'scoped memory for tpu_custom_call.1']
    #allocation9 [shape = 'u8[28672]{0}', space=vmem, size = 0x7000, scoped, tag = 'input window, operand 2, single buffered']
    #allocation10 [shape = 's32[1]{0}', space=sflag, size = 0x4, scoped, tag = 'scoped memory for tpu_custom_call.1']
    #allocation11 [shape = 'u8[4096]{0}', space=vmem, size = 0x1000, scoped, tag = 'input window, operand 3, single buffered']
    #allocation12 [shape = 'u8[4096]{0}', space=vmem, size = 0x1000, scoped, tag = 'input window, operand 4, single buffered']
    #allocation13 [shape = 's32[1]{0}', space=sflag, size = 0x4, scoped, tag = 'scoped memory for tpu_custom_call.1']
    #allocation14 [shape = 'u8[4096]{0}', space=vmem, size = 0x1000, scoped, tag = 'output window, operand 0, single buffered']
    %11 = vsyncpa [#allocation7], 0
    %12 = vsyncpa [#allocation10], 0
    %13 = vsyncpa [#allocation13], 0
    %14 = vsyncpa [#allocation8], 0
    // Predicated region
    $region2: #{tpu_custom_call.1} parent=1 // pred_check
      _
    $region3: #{tpu_custom_call.1} parent=1 // pred_check_branch
      %16 = sbr.rel (0) target = $region5
    $region4: #{tpu_custom_call.1} parent=1 // pred_region
      %s17 = sadd.s32 0, 0
      %p18 = scmp.lt.s32.totalorder %s17, 0
      %s19 = scalar_select %p18, %s17, 0
      %s20 = smul.u32 4, %s19
      %s21 = ssub.s32 1, %s20
      %s22 = smul.u32 2, %s21
      %s23 = smul.u32 %s22, 7
      %s24 = ssub.s32 56, %s23
      %s25 = sshll.u32 %s24, 4
      %26 = vsyncadd [#allocation7], %s25
      %p27 = scmp.ne.s32.totalorder 0, %s23
      %s28 = smul.addr %s20, 7
      %s29 = smul.addr %s28, 2
      %s30 = scalar_lea.hbm %s1, %s29
      %s31 = smul.u32 14, %s21
      %s32 = sshll.u32 %s30, 4
      %s33 = int_to_ptr.hbm [resolvable:$true] %s32
      %s34 = sshll.u32 [#allocation6], 4
      %s35 = int_to_ptr.vmem [resolvable:$true] %s34
      %s36 = sshll.u32 %s31, 4
      %40 = dma.hbm_to_vmem [thread:$0]  (%p27), %s33, %s36, %s35, [#allocation7], 224, 224, 14
    $region5: #{tpu_custom_call.1} parent=1 // pred_fallthru
      _
    // Predicated region
    $region6: #{tpu_custom_call.1} parent=1 // pred_check
      _
    $region7: #{tpu_custom_call.1} parent=1 // pred_check_branch
      %42 = sbr.rel (0) target = $region9
    $region8: #{tpu_custom_call.1} parent=1 // pred_region
      %s43 = sadd.s32 0, 0
      %p44 = scmp.lt.s32.totalorder %s43, 0
      %s45 = scalar_select %p44, %s43, 0
      %s46 = smul.u32 4, %s45
      %s47 = ssub.s32 1, %s46
      %s48 = smul.u32 2, %s47
      %s49 = smul.u32 %s48, 7
      %s50 = ssub.s32 56, %s49
      %s51 = sshll.u32 %s50, 4
      %52 = vsyncadd [#allocation10], %s51
      %p53 = scmp.ne.s32.totalorder 0, %s49
      %s54 = smul.addr %s46, 7
      %s55 = smul.addr %s54, 2
      %s56 = scalar_lea.hbm %s2, %s55
      %s57 = smul.u32 14, %s47
      %s58 = sshll.u32 %s56, 4
      %s59 = int_to_ptr.hbm [resolvable:$true] %s58
      %s60 = sshll.u32 [#allocation9], 4
      %s61 = int_to_ptr.vmem [resolvable:$true] %s60
      %s62 = sshll.u32 %s57, 4
      %66 = dma.hbm_to_vmem [thread:$0]  (%p53), %s59, %s62, %s61, [#allocation10], 224, 224, 14
    $region9: #{tpu_custom_call.1} parent=1 // pred_fallthru
      _
    // Predicated region
    $region10: #{tpu_custom_call.1} parent=1 // pred_check
      _
    $region11: #{tpu_custom_call.1} parent=1 // pred_check_branch
      %68 = sbr.rel (0) target = $region13
    $region12: #{tpu_custom_call.1} parent=1 // pred_region
      %s69 = sadd.s32 0, 0
      %71 = vsyncadd [#allocation10], 0
      %s72 = smul.addr %s69, 8
      %s73 = scalar_lea.hbm %s3, %s72
      %s75 = sshll.u32 %s73, 4
      %s76 = int_to_ptr.hbm [resolvable:$true] %s75
      %s77 = sshll.u32 [#allocation11], 4
      %s78 = int_to_ptr.vmem [resolvable:$true] %s77
      %80 = dma.hbm_to_vmem [thread:$0]  %s76, 128, %s78, [#allocation10]
    $region13: #{tpu_custom_call.1} parent=1 // pred_fallthru
      _
    // Predicated region
    $region14: #{tpu_custom_call.1} parent=1 // pred_check
      _
    $region15: #{tpu_custom_call.1} parent=1 // pred_check_branch
      %82 = sbr.rel (0) target = $region17
    $region16: #{tpu_custom_call.1} parent=1 // pred_region
      %s83 = sadd.s32 0, 0
      %85 = vsyncadd [#allocation13], 0
      %s86 = smul.addr %s83, 8
      %s87 = scalar_lea.hbm %s4, %s86
      %s89 = sshll.u32 %s87, 4
      %s90 = int_to_ptr.hbm [resolvable:$true] %s89
      %s91 = sshll.u32 [#allocation12], 4
      %s92 = int_to_ptr.vmem [resolvable:$true] %s91
      %94 = dma.hbm_to_vmem [thread:$0]  %s90, 128, %s92, [#allocation13]
    $region17: #{tpu_custom_call.1} parent=1 // pred_fallthru
      _
    // Predicated region
    $region18: #{tpu_custom_call.1} parent=1 // pred_check
      _
    $region19: #{tpu_custom_call.1} parent=1 // pred_check_branch
      %96 = sbr.rel (0) target = $region21
    $region20: #{tpu_custom_call.1} parent=1 // pred_region
      %98 = dma.done [#allocation7], 896
    $region21: #{tpu_custom_call.1} parent=1 // pred_fallthru
      _
    // Predicated region
    $region22: #{tpu_custom_call.1} parent=1 // pred_check
      _
    $region23: #{tpu_custom_call.1} parent=1 // pred_check_branch
      %100 = sbr.rel (0) target = $region25
    $region24: #{tpu_custom_call.1} parent=1 // pred_region
      %102 = dma.done [#allocation10], 896
    $region25: #{tpu_custom_call.1} parent=1 // pred_fallthru
      _
    // Predicated region
    $region26: #{tpu_custom_call.1} parent=1 // pred_check
      _
    $region27: #{tpu_custom_call.1} parent=1 // pred_check_branch
      %104 = sbr.rel (0) target = $region29
    $region28: #{tpu_custom_call.1} parent=1 // pred_region
      %106 = dma.done [#allocation10], 128
    $region29: #{tpu_custom_call.1} parent=1 // pred_fallthru
      _
    // Predicated region
    $region30: #{tpu_custom_call.1} parent=1 // pred_check
      _
    $region31: #{tpu_custom_call.1} parent=1 // pred_check_branch
      %108 = sbr.rel (0) target = $region33
    $region32: #{tpu_custom_call.1} parent=1 // pred_region
      %110 = dma.done [#allocation13], 128
    $region33: #{tpu_custom_call.1} parent=1 // pred_fallthru
      _
    %s111 = sadd.s32 0, 0
    %p112 = scmp.lt.s32.totalorder %s111, 0
    %s113 = scalar_select %p112, %s111, 0
    %s114 = smul.u32 4, %s113
    %s115 = ssub.s32 1, %s114
    %s116 = smul.u32 2, %s115
    %s117 = smul.u32 %s116, 7
    %s118 = sadd.s32 0, 0
    %p119 = scmp.lt.s32.totalorder %s118, 0
    %s120 = scalar_select %p119, %s118, 0
    %s121 = smul.u32 4, %s120
    %s122 = ssub.s32 1, %s121
    %s123 = smul.u32 2, %s122
    %s124 = smul.u32 %s123, 7
    %s125 = sadd.s32 0, 0
    %s126 = sadd.s32 0, 0
    %p127 = scmp.eq.s32.totalorder 0, 0
    // Predicated region
    $region34: #{tpu_custom_call.1} parent=1 // pred_check
      %p128 = pneg %p127
    $region35: #{tpu_custom_call.1} parent=1 // pred_check_branch
      %130 = sbr.rel (%p128) target = $region37
    $region36: #{tpu_custom_call.1} parent=1 // pred_region
      %131 = vst [vmem:[#allocation2] sm:$0xff] 0.0
      %132 = vst [vmem:[#allocation3] sm:$0xff] 0.0
      %133 = vst [vmem:[#allocation3 + $0x8] sm:$0xff] 0.0
      %134 = vst [vmem:[#allocation3 + $0x10] sm:$0xff] 0.0
      %135 = vst [vmem:[#allocation3 + $0x18] sm:$0xff] 0.0
      %136 = vst [vmem:[#allocation3 + $0x20] sm:$0xff] 0.0
      %137 = vst [vmem:[#allocation3 + $0x28] sm:$0xff] 0.0
      %vm138 = vcmask 130048
      %139 = vst.msk [vmem:[#allocation3 + $0x30] sm:$0xff] %vm138, 0.0
    $region37: #{tpu_custom_call.1} parent=1 // pred_fallthru
      _
    %v140 = vld [vmem:[#allocation9] sm:$0xff]
    %v141 = vld [vmem:[#allocation9 + $0x8] sm:$0x3f]
    %v142 = vld [vmem:[#allocation9 + $0xe] sm:$0xff]
    %v143 = vld [vmem:[#allocation9 + $0x16] sm:$0x3f]
    %v144 = vld [vmem:[#allocation9 + $0x1c] sm:$0xff]
    %v145 = vld [vmem:[#allocation9 + $0x24] sm:$0x3f]
    %v146 = vld [vmem:[#allocation9 + $0x2a] sm:$0xff]
    %v147 = vld [vmem:[#allocation9 + $0x32] sm:$0x3f]
    %v148 = vld [vmem:[#allocation6] sm:$0xff]
    %v149 = vld [vmem:[#allocation6 + $0x8] sm:$0x3f]
    %v150 = vld [vmem:[#allocation6 + $0xe] sm:$0xff]
    %v151 = vld [vmem:[#allocation6 + $0x16] sm:$0x3f]
    %v152 = vld [vmem:[#allocation6 + $0x1c] sm:$0xff]
    %v153 = vld [vmem:[#allocation6 + $0x24] sm:$0x3f]
    %v154 = vld [vmem:[#allocation6 + $0x2a] sm:$0xff]
    %v155 = vld [vmem:[#allocation6 + $0x32] sm:$0x3f]
    %v156 = vsub.f32 %v140, %v148
    %v157 = vsub.f32 %v141, %v149
    %v158 = vsub.f32 %v142, %v150
    %v159 = vsub.f32 %v143, %v151
    %v160 = vsub.f32 %v144, %v152
    %v161 = vsub.f32 %v145, %v153
    %v162 = vsub.f32 %v146, %v154
    %v163 = vsub.f32 %v147, %v155
    %v164 = vmul.f32 %v156, %v156
    %v165 = vmul.f32 %v157, %v157
    %v166 = vmul.f32 %v158, %v158
    %v167 = vmul.f32 %v159, %v159
    %v168 = vmul.f32 %v160, %v160
    %v169 = vmul.f32 %v161, %v161
    %v170 = vmul.f32 %v162, %v162
    %v171 = vmul.f32 %v163, %v163
    %s172 = sadd.s32 0, 0
    %s173 = smul.u32 %s172, 8
    %v174 = vlaneseq
    %v175 = vshrl.u32 %v174, 7
    %v176 = vstv %s173
    %v177 = vadd.s32 %v176, %v175
    %s178 = sld [smem:[#allocation5]]
    %v179 = vstv %s178
    %vm180 = vcmp.lt.s32.totalorder %v177, %v179
    %v181 = vsel %vm180, 1, 0
    %vm182 = vcmp.eq.s32.totalorder %v181, 1
    %191 = vst [vmem:[#allocation1] ss:$4 sm:$0xff] %v164
    %s192 = scalar_lea.vmem [#allocation1], 1
    %193 = vst [vmem:[%s192] ss:$4 sm:$0xff] %v166
    %s194 = scalar_lea.vmem [#allocation1], 2
    %195 = vst [vmem:[%s194] ss:$4 sm:$0xff] %v168
    %s196 = scalar_lea.vmem [#allocation1], 3
    %197 = vst [vmem:[%s196] ss:$4 sm:$0xff] %v170
    %s198 = scalar_lea.vmem [#allocation1], 32
    %199 = vst [vmem:[%s198] ss:$4 sm:$0xff] %v165
    %s200 = scalar_lea.vmem [#allocation1], 33
    %201 = vst [vmem:[%s200] ss:$4 sm:$0xff] %v167
    %s202 = scalar_lea.vmem [#allocation1], 34
    %203 = vst [vmem:[%s202] ss:$4 sm:$0xff] %v169
    %s204 = scalar_lea.vmem [#allocation1], 35
    %205 = vst [vmem:[%s204] ss:$4 sm:$0xff] %v171
    %v206 = vld.sshfl [vmem:[#allocation1] sm:$0xff pattern:$0x73625140]
    %v207 = vld.sshfl [vmem:[#allocation1 + $0x8] sm:$0xff pattern:$0x73625140]
    %v208 = vld.sshfl [vmem:[#allocation1 + $0x10] sm:$0xff pattern:$0x73625140]
    %v209 = vld.sshfl [vmem:[#allocation1 + $0x18] sm:$0xff pattern:$0x73625140]
    %v210 = vld.sshfl [vmem:[#allocation1 + $0x20] sm:$0xff pattern:$0x73625140]
    %v211 = vld.sshfl [vmem:[#allocation1 + $0x28] sm:$0xff pattern:$0x73625140]
    %v212 = vld.sshfl [vmem:[#allocation1 + $0x30] sm:$0xff pattern:$0x73625140]
    %v220 = vsel %vm182, %v206, 0.0
    %v221 = vsel %vm182, %v207, 0.0
    %v222 = vsel %vm182, %v208, 0.0
    %v223 = vsel %vm182, %v209, 0.0
    %v224 = vsel %vm182, %v210, 0.0
    %v225 = vsel %vm182, %v211, 0.0
    %v226 = vsel %vm182, %v212, 0.0
    %v227 = vld [vmem:[#allocation3] sm:$0xff]
    %v228 = vld [vmem:[#allocation3 + $0x8] sm:$0xff]
    %v229 = vld [vmem:[#allocation3 + $0x10] sm:$0xff]
    %v230 = vld [vmem:[#allocation3 + $0x18] sm:$0xff]
    %v231 = vld [vmem:[#allocation3 + $0x20] sm:$0xff]
    %v232 = vld [vmem:[#allocation3 + $0x28] sm:$0xff]
    %v233 = vld [vmem:[#allocation3 + $0x30] sm:$0xff]
    %v234 = vadd.f32 %v220, 0.0
    %v235 = vadd.f32 %v221, 0.0
    %v236 = vadd.f32 %v222, 0.0
    %v237 = vadd.f32 %v223, 0.0
    %v238 = vadd.f32 %v224, 0.0
    %v239 = vadd.f32 %v225, 0.0
    %v240 = vadd.f32 %v226, 0.0
    %v241 = vadd.f32 %v227, %v234
    %v242 = vadd.f32 %v228, %v235
    %v243 = vadd.f32 %v229, %v236
    %v244 = vadd.f32 %v230, %v237
    %v245 = vadd.f32 %v231, %v238
    %v246 = vadd.f32 %v232, %v239
    %v247 = vadd.f32 %v233, %v240
    %248 = vst [vmem:[#allocation3] sm:$0xff] %v241
    %249 = vst [vmem:[#allocation3 + $0x8] sm:$0xff] %v242
    %250 = vst [vmem:[#allocation3 + $0x10] sm:$0xff] %v243
    %251 = vst [vmem:[#allocation3 + $0x18] sm:$0xff] %v244
    %252 = vst [vmem:[#allocation3 + $0x20] sm:$0xff] %v245
    %253 = vst [vmem:[#allocation3 + $0x28] sm:$0xff] %v246
    %vm254 = vcmask 130048
    %255 = vst.msk [vmem:[#allocation3 + $0x30] sm:$0xff] %vm254, %v247
    %v256 = vld [vmem:[#allocation11] sm:$0xff]
    %v257 = vld [vmem:[#allocation12] sm:$0xff]
    %v258 = vsub.f32 0.9, %v257
    %v259 = vmax.f32 %v258, 0.0
    %v260 = vmul.f32 %v259, %v259
    %v261 = vsub.f32 %v257, 0.1
    %v262 = vmax.f32 %v261, 0.0
    %v263 = vmul.f32 %v262, %v262
    %v264 = vmul.f32 %v263, 0.5
    %v265 = vsub.f32 %v260, %v264
    %v266 = vmul.f32 %v256, %v265
    %v267 = vadd.f32 %v264, %v266
    %v268 = vld [vmem:[#allocation2] sm:$0xff]
    %v269 = vadd.f32 %v267, 0.0
    %v270 = vadd.f32 %v268, %v269
    %271 = vst [vmem:[#allocation2] sm:$0xff] %v270
    // Predicated region
    $region38: #{tpu_custom_call.1} parent=1 // pred_check
      %p272 = pneg %p127
    $region39: #{tpu_custom_call.1} parent=1 // pred_check_branch
      %274 = sbr.rel (%p272) target = $region41
    $region40: #{tpu_custom_call.1} parent=1 // pred_region
      %v275 = vld [vmem:[#allocation2] sm:$0xff]
      %276 = vadd.xlane.f32.xlu0 %v275
      %v277 = vpop.xlane.xlu0 %276
      %v278 = vrot.slane %v277, 4
      %v279 = vadd.f32 %v277, %v278
      %v280 = vrot.slane %v279, 2
      %v281 = vadd.f32 %v279, %v280
      %v282 = vrot.slane %v281, 1
      %v283 = vadd.f32 %v281, %v282
      %s284 = vtos %v283
      %v285 = vld [vmem:[#allocation3] sm:$0xff]
      %v286 = vld [vmem:[#allocation3 + $0x8] sm:$0xff]
      %v287 = vld [vmem:[#allocation3 + $0x10] sm:$0xff]
      %v288 = vld [vmem:[#allocation3 + $0x18] sm:$0xff]
      %v289 = vld [vmem:[#allocation3 + $0x20] sm:$0xff]
      %v290 = vld [vmem:[#allocation3 + $0x28] sm:$0xff]
      %v291 = vld [vmem:[#allocation3 + $0x30] sm:$0xff]
      %v292 = vadd.f32 %v285, %v286
      %v293 = vadd.f32 %v292, %v287
      %v294 = vadd.f32 %v293, %v288
      %v295 = vadd.f32 %v294, %v289
      %v296 = vadd.f32 %v295, %v290
      %v297 = vsel %vm254, %v291, 0.0
      %v298 = vadd.f32 %v296, %v297
      %299 = vadd.xlane.f32.xlu0 %v298
      %v300 = vpop.xlane.xlu0 %299
      %v301 = vrot.slane %v300, 4
      %v302 = vadd.f32 %v300, %v301
      %v303 = vrot.slane %v302, 2
      %v304 = vadd.f32 %v302, %v303
      %v305 = vrot.slane %v304, 1
      %v306 = vadd.f32 %v304, %v305
      %s307 = vtos %v306
      %s308 = smul.f32 %s307, 0.0005
      %s309 = sadd.f32 %s284, %s308
      %s310 = sld [smem:[#allocation5]]
      %s311 = scvt.s32.f32 %s310
      %v312 = vstv %s311
      %v313 = vrcp.pop %v312
      %v314 = vmul.f32 %v312, %v313
      %v315 = vsub.f32 1.0, %v314
      %v316 = vmul.f32 %v313, %v315
      %v317 = vadd.f32 %v313, %v316
      %vm318 = vweird.f32 %v312
      %vm319 = vweird.f32 %v313
      %vm320 = vmor %vm318, %vm319
      %v321 = vsel %vm320, %v313, %v317
      %v322 = vand.u32 2147483647, %v312
      %vm323 = vcmp.eq.f32.partialorder %v322, 8.507059e+37
      %v324 = vand.u32 %v312, 2147483648
      %v325 = vor.u32 1.1754944e-38, %v324
      %v326 = vsel %vm323, %v325, %v321
      %s327 = vtos %v326
      %s328 = smul.f32 %s309, %s327
      %v329 = vstv %s328
      %330 = vst [vmem:[#allocation14] sm:$0xff] %v329
    $region41: #{tpu_custom_call.1} parent=1 // pred_fallthru
      _
    // Predicated region
    $region42: #{tpu_custom_call.1} parent=1 // pred_check
      _
    $region43: #{tpu_custom_call.1} parent=1 // pred_check_branch
      %332 = sbr.rel (0) target = $region45
    $region44: #{tpu_custom_call.1} parent=1 // pred_region
      %334 = vsyncadd [#allocation8], 0
      %s336 = sshll.u32 [#allocation14], 4
      %s337 = int_to_ptr.vmem [resolvable:$true] %s336
      %s338 = sshll.u32 %s5, 4
      %s339 = int_to_ptr.hbm [resolvable:$true] %s338
      %341 = dma.vmem_to_hbm [thread:$0]  %s337, 128, %s339, [#allocation8]
    $region45: #{tpu_custom_call.1} parent=1 // pred_fallthru
      _
    // Predicated region
    $region46: #{tpu_custom_call.1} parent=1 // pred_check
      _
    $region47: #{tpu_custom_call.1} parent=1 // pred_check_branch
      %343 = sbr.rel (0) target = $region49
    $region48: #{tpu_custom_call.1} parent=1 // pred_region
      %345 = dma.done [#allocation8], 128
    $region49: #{tpu_custom_call.1} parent=1 // pred_fallthru
      _
    %346 = vsyncpa [#allocation7], 1
    %347 = vsyncpa [#allocation10], 1
    %348 = vsyncpa [#allocation13], 1
    %349 = vsyncpa [#allocation8], 1

</llo_original>
